<compile_context>
chip_gen: v7x
topology: tpu7x:2x2x1
jax: 0.10.0
libtpu: 0.0.40
codegen_flags: <defaults>
</compile_context>

<pallas_src>
import jax
import jax.numpy as jnp
from jax.experimental import pallas as pl
from jax.experimental.pallas import tpu as pltpu


HIDDEN = 64            # stand-in for PretrainedModel.config.hidden_size (small)
EMB_OUT = 32           # embedding_transform output dim
NEW_FEATS = 40         # new_feats feature dim (module uses Linear(32 + 40, 32))
FC_HID = 32            # hidden width of EPS_FCNN / Nc_FCNN
FUSED_HID = 2 * FC_HID # both heads' first layers stacked column-wise -> 64
ROW_ALIGN = 16         # bf16 sublane packing: 16 rows per vreg
MAX_TB = 4096          # batch tile; amortizes the ~0.35 us/grid-step overhead.
                       # ~2 MiB of double-buffered bf16 streams per tile -- far
                       # below the 16 MiB (v5e) / 32 MiB (v6e/v7x) scoped-VMEM
                       # defaults, so no vmem_limit_bytes override is needed.


def multitask_kernel(cls_ref, feats_ref,
                     w_cls_ref, w_feat_ref, b1_ref,
                     w2_ref, b2_ref,
                     out_ref):
    """Fused forward for one batch tile:
         h   = cls @ W_cls + feats @ W_feat + b1        [TB, 64]  (bf16 MXU, f32 acc)
         h   = SiLU(h)                                  (Dropout == identity)
         out = h @ W2_blockdiag + b2                    [TB, 2]
       h[:, :32] / W2[:32, 0] carry the EPS head, h[:, 32:] / W2[32:, 1] the Nc
       head, so column 0 of out == EPS output and column 1 == Nc output."""
    h = (jnp.dot(cls_ref[...], w_cls_ref[...],
                 preferred_element_type=jnp.float32)
         + jnp.dot(feats_ref[...], w_feat_ref[...],
                   preferred_element_type=jnp.float32)
         + b1_ref[...])                                   # [TB, 64] f32
    # SiLU = x * sigmoid(x); sigmoid goes to the EUP (free slot vs VALU).
    h = h * jax.nn.sigmoid(h)
    out_ref[...] = (jnp.dot(h, w2_ref[...],
                            preferred_element_type=jnp.float32)
                    + b2_ref[...])                        # [TB, 2] f32


def init_params(key):
    """Deterministic parameter init matching the PyTorch module's shapes.
       PyTorch nn.Linear(in, out) stores weight [out, in]; we keep [in, out]."""
    ks = jax.random.split(key, 12)
    scale = 0.05
    return {
        "w_emb": scale * jax.random.normal(ks[0], (HIDDEN, EMB_OUT), jnp.float32),
        "b_emb": scale * jax.random.normal(ks[1], (1, EMB_OUT), jnp.float32),
        # EPS_FCNN: Linear(72, 32) -> Dropout(0.3) -> SiLU -> Linear(32, 1)
        "w_e1": scale * jax.random.normal(ks[2], (EMB_OUT + NEW_FEATS, FC_HID), jnp.float32),
        "b_e1": scale * jax.random.normal(ks[3], (1, FC_HID), jnp.float32),
        "w_e2": scale * jax.random.normal(ks[4], (FC_HID, 1), jnp.float32),
        "b_e2": scale * jax.random.normal(ks[5], (1, 1), jnp.float32),
        # Nc_FCNN: Linear(72, 32) -> Dropout(0.3) -> SiLU -> Linear(32, 1)
        "w_n1": scale * jax.random.normal(ks[6], (EMB_OUT + NEW_FEATS, FC_HID), jnp.float32),
        "b_n1": scale * jax.random.normal(ks[7], (1, FC_HID), jnp.float32),
        "w_n2": scale * jax.random.normal(ks[8], (FC_HID, 1), jnp.float32),
        "b_n2": scale * jax.random.normal(ks[9], (1, 1), jnp.float32),
    }


def fuse_params(p):
    """One-time algebraic fusion (param-load time).  Fold in f32, then cast the
       two streamed first-layer weights to bf16; biases/second layer stay f32."""
    w_e1_top, w_e1_bot = p["w_e1"][:EMB_OUT], p["w_e1"][EMB_OUT:]
    w_n1_top, w_n1_bot = p["w_n1"][:EMB_OUT], p["w_n1"][EMB_OUT:]
    w_cls = jnp.concatenate([p["w_emb"] @ w_e1_top,
                             p["w_emb"] @ w_n1_top], axis=1)           # [64, 64]
    w_feat = jnp.concatenate([w_e1_bot, w_n1_bot], axis=1)             # [40, 64]
    b1 = jnp.concatenate([p["b_emb"] @ w_e1_top + p["b_e1"],
                          p["b_emb"] @ w_n1_top + p["b_n1"]], axis=1)  # [1, 64]
    w2 = jnp.zeros((FUSED_HID, 2), jnp.float32)
    w2 = w2.at[:FC_HID, 0:1].set(p["w_e2"])
    w2 = w2.at[FC_HID:, 1:2].set(p["w_n2"])                            # [64, 2]
    b2 = jnp.concatenate([p["b_e2"], p["b_n2"]], axis=1)               # [1, 2]
    return {"w_cls": w_cls.astype(jnp.bfloat16),
            "w_feat": w_feat.astype(jnp.bfloat16),
            "b1": b1, "w2": w2, "b2": b2}


def _round_up(x, m):
    return ((x + m - 1) // m) * m


def _pick_tile(B):
    """Pick the batch tile (trace-time, B is static).
       * tiny batches: one full-extent block (block dims == array dims is legal
         regardless of the (8,128) rule).
       * otherwise: the largest tile <= MAX_TB that still yields >= 2 grid
         steps, aligned to 16 rows (bf16 packing) -> both v7x TensorCores get
         work while per-step overhead stays amortized for large B."""
    if B < 2 * ROW_ALIGN:
        return B
    return min(MAX_TB, _round_up(pl.cdiv(B, 2), ROW_ALIGN))


@jax.jit
def multitask_forward(last_hidden_state, new_feats, fused):
    # CLS-token slice (outputs.last_hidden_state[:, 0, :]) fused with the bf16
    # downcast in one tiny XLA op.
    # TODO(synk): could be a squeezed-seq BlockSpec DMA'ing CLS rows straight
    #             from HBM; kept in the wrapper because a size-1 second-to-last
    #             block dim against seq=8 breaks the (8,128) tiling rule and
    #             the resulting strided DMA is narrow.
    cls = last_hidden_state[:, 0, :].astype(jnp.bfloat16)   # [B, HIDDEN]
    feats = new_feats.astype(jnp.bfloat16)                  # [B, NEW_FEATS]
    B = cls.shape[0]
    tb = _pick_tile(B)
    grid = (pl.cdiv(B, tb),)   # ragged last tile handled by masked writes

    row_map = lambda i: (i, 0)       # batch-tiled operands
    const_map = lambda i: (0, 0)     # VMEM-resident weights (constant block)

    return pl.pallas_call(
        multitask_kernel,
        out_shape=jax.ShapeDtypeStruct((B, 2), jnp.float32),
        grid=grid,
        in_specs=[
            pl.BlockSpec((tb, HIDDEN), row_map),              # cls (bf16)
            pl.BlockSpec((tb, NEW_FEATS), row_map),           # new_feats (bf16)
            pl.BlockSpec((HIDDEN, FUSED_HID), const_map),     # W_cls (bf16)
            pl.BlockSpec((NEW_FEATS, FUSED_HID), const_map),  # W_feat (bf16)
            pl.BlockSpec((1, FUSED_HID), const_map),          # b1 (f32)
            pl.BlockSpec((FUSED_HID, 2), const_map),          # W2 block-diag (f32)
            pl.BlockSpec((1, 2), const_map),                  # b2 (f32)
        ],
        out_specs=pl.BlockSpec((tb, 2), row_map),
        compiler_params=pltpu.CompilerParams(
            dimension_semantics=("parallel",)),   # shard batch tiles on v7x
    )(cls, feats,
      fused["w_cls"], fused["w_feat"], fused["b1"], fused["w2"], fused["b2"])


def reference_forward(last_hidden_state, new_feats, p):
    """Pure-JAX f32 reference of the ORIGINAL (unfused) module math."""
    cls = last_hidden_state[:, 0, :]
    t = cls @ p["w_emb"] + p["b_emb"]
    combined = jnp.concatenate([t, new_feats], axis=1)

    def head(w1, b1, w2, b2):
        h = combined @ w1 + b1
        h = jax.nn.silu(h)
        return h @ w2 + b2

    eps = head(p["w_e1"], p["b_e1"], p["w_e2"], p["b_e2"])
    nc = head(p["w_n1"], p["b_n1"], p["w_n2"], p["b_n2"])
    return jnp.concatenate([eps, nc], axis=1)


def _check(B, S, key, params, fused, atol=1e-2, rtol=5e-2):
    k_hidden, k_feats = jax.random.split(key)
    # Stand-in for PretrainedModel(input_ids, attention_mask).last_hidden_state
    last_hidden_state = jax.random.normal(k_hidden, (B, S, HIDDEN), jnp.float32)
    new_feats = jax.random.normal(k_feats, (B, NEW_FEATS), jnp.float32)

    out = multitask_forward(last_hidden_state, new_feats, fused)
    out = jax.block_until_ready(out)

    ref = reference_forward(last_hidden_state, new_feats, params)
    assert out.shape == (B, 2), out.shape
    # bf16 activation/weight streaming (f32 accumulation) -> loosened tolerance.
    assert jnp.allclose(out, ref, atol=atol, rtol=rtol), (out, ref)
    return out


if __name__ == "__main__":
    key = jax.random.PRNGKey(0)
    k_small, k_ragged, k_params = jax.random.split(key, 3)

    params = init_params(k_params)
    fused = fuse_params(params)

    # Small single-tile path (block dims == full array dims).
    _check(B=2, S=8, key=k_small, params=params, fused=fused)

    # Multi-tile + ragged-last-tile path: B=100 -> tb=64, grid=(2,), last tile
    # has 36 valid rows (exercises masked partial writes and megacore split).
    _check(B=100, S=8, key=k_ragged, params=params, fused=fused)

    print("KERNEL_OK")
</pallas_src>

<mosaic_0001>
module attributes {stable_mosaic.version = 11 : i64} {
  func.func @multitask_kernel(%arg0: i32, %arg1: memref<2x64xbf16, #tpu.memory_space<vmem>>, %arg2: memref<2x40xbf16, #tpu.memory_space<vmem>>, %arg3: memref<64x64xbf16, #tpu.memory_space<vmem>>, %arg4: memref<40x64xbf16, #tpu.memory_space<vmem>>, %arg5: memref<1x64xf32, #tpu.memory_space<vmem>>, %arg6: memref<64x2xf32, #tpu.memory_space<vmem>>, %arg7: memref<1x2xf32, #tpu.memory_space<vmem>>, %arg8: memref<2x2xf32, #tpu.memory_space<vmem>>) attributes {dimension_semantics = [#tpu.dimension_semantics<parallel>], iteration_bounds = array<i64: 1>, scalar_prefetch = 0 : i64, scratch_operands = 0 : i64, tpu.core_type = #tpu.core_type<tc>, window_params = [{transform_indices = @transform_0, window_bounds = array<i64: 2, 64>}, {transform_indices = @transform_1, window_bounds = array<i64: 2, 40>}, {pipeline_mode = #tpu.pipeline_mode<synchronous>, transform_indices = @transform_2, window_bounds = array<i64: 64, 64>}, {pipeline_mode = #tpu.pipeline_mode<synchronous>, transform_indices = @transform_3, window_bounds = array<i64: 40, 64>}, {pipeline_mode = #tpu.pipeline_mode<synchronous>, transform_indices = @transform_4, window_bounds = array<i64: 1, 64>}, {pipeline_mode = #tpu.pipeline_mode<synchronous>, transform_indices = @transform_5, window_bounds = array<i64: 64, 2>}, {pipeline_mode = #tpu.pipeline_mode<synchronous>, transform_indices = @transform_6, window_bounds = array<i64: 1, 2>}, {transform_indices = @transform_7, window_bounds = array<i64: 2, 2>}]} {
    %c0 = arith.constant 0 : index
    %c0_0 = arith.constant 0 : index
    %0 = vector.load %arg1[%c0, %c0_0] : memref<2x64xbf16, #tpu.memory_space<vmem>>, vector<2x64xbf16>
    %c0_1 = arith.constant 0 : index
    %c0_2 = arith.constant 0 : index
    %1 = vector.load %arg3[%c0_1, %c0_2] : memref<64x64xbf16, #tpu.memory_space<vmem>>, vector<64x64xbf16>
    %cst = arith.constant dense<0.000000e+00> : vector<2x64xf32>
    %2 = tpu.matmul %0, %1, %cst {dimension_numbers = #tpu.dot_dimension_numbers<[1], [0], [0], [1], [0, 0, 1, 1], [], []>} : vector<2x64xbf16>, vector<64x64xbf16>, vector<2x64xf32> -> vector<2x64xf32>
    %c0_3 = arith.constant 0 : index
    %c0_4 = arith.constant 0 : index
    %3 = vector.load %arg2[%c0_3, %c0_4] : memref<2x40xbf16, #tpu.memory_space<vmem>>, vector<2x40xbf16>
    %c0_5 = arith.constant 0 : index
    %c0_6 = arith.constant 0 : index
    %4 = vector.load %arg4[%c0_5, %c0_6] : memref<40x64xbf16, #tpu.memory_space<vmem>>, vector<40x64xbf16>
    %cst_7 = arith.constant dense<0.000000e+00> : vector<2x64xf32>
    %5 = tpu.matmul %3, %4, %cst_7 {dimension_numbers = #tpu.dot_dimension_numbers<[1], [0], [0], [1], [0, 0, 1, 1], [], []>} : vector<2x40xbf16>, vector<40x64xbf16>, vector<2x64xf32> -> vector<2x64xf32>
    %6 = arith.addf %2, %5 : vector<2x64xf32>
    %c0_8 = arith.constant 0 : index
    %c0_9 = arith.constant 0 : index
    %7 = vector.load %arg5[%c0_8, %c0_9] : memref<1x64xf32, #tpu.memory_space<vmem>>, vector<1x64xf32>
    %8 = vector.broadcast %7 : vector<1x64xf32> to vector<2x64xf32>
    %9 = arith.addf %6, %8 : vector<2x64xf32>
    %10 = arith.negf %9 : vector<2x64xf32>
    %11 = math.exp %10 : vector<2x64xf32>
    %cst_10 = arith.constant 1.000000e+00 : f32
    %12 = vector.broadcast %cst_10 : f32 to vector<2x64xf32>
    %13 = arith.addf %12, %11 : vector<2x64xf32>
    %14 = arith.divf %12, %13 : vector<2x64xf32>
    %15 = arith.mulf %9, %14 : vector<2x64xf32>
    %c0_11 = arith.constant 0 : index
    %c0_12 = arith.constant 0 : index
    %16 = vector.load %arg6[%c0_11, %c0_12] : memref<64x2xf32, #tpu.memory_space<vmem>>, vector<64x2xf32>
    %cst_13 = arith.constant dense<0.000000e+00> : vector<2x2xf32>
    %17 = tpu.matmul %15, %16, %cst_13 {dimension_numbers = #tpu.dot_dimension_numbers<[1], [0], [0], [1], [0, 0, 1, 1], [], []>} : vector<2x64xf32>, vector<64x2xf32>, vector<2x2xf32> -> vector<2x2xf32>
    %c0_14 = arith.constant 0 : index
    %c0_15 = arith.constant 0 : index
    %18 = vector.load %arg7[%c0_14, %c0_15] : memref<1x2xf32, #tpu.memory_space<vmem>>, vector<1x2xf32>
    %19 = vector.broadcast %18 : vector<1x2xf32> to vector<2x2xf32>
    %20 = arith.addf %17, %19 : vector<2x2xf32>
    %c0_16 = arith.constant 0 : index
    %c0_17 = arith.constant 0 : index
    %21 = vector.load %arg8[%c0_16, %c0_17] : memref<2x2xf32, #tpu.memory_space<vmem>>, vector<2x2xf32>
    tpu.vector_store %arg8[%c0_16, %c0_17], %20 {strides = array<i32>} : memref<2x2xf32, #tpu.memory_space<vmem>>, vector<2x2xf32>,
    return
  }
  func.func @transform_0(%arg0: i32) -> (i32, i32) {
    %c0_i32 = arith.constant 0 : i32
    %c0_i32_0 = arith.constant 0 : i32
    return %arg0, %c0_i32 : i32, i32
  }
  func.func @transform_1(%arg0: i32) -> (i32, i32) {
    %c0_i32 = arith.constant 0 : i32
    %c0_i32_0 = arith.constant 0 : i32
    return %arg0, %c0_i32 : i32, i32
  }
  func.func @transform_2(%arg0: i32) -> (i32, i32) {
    %c0_i32 = arith.constant 0 : i32
    %c0_i32_0 = arith.constant 0 : i32
    %c0_i32_1 = arith.constant 0 : i32
    return %c0_i32, %c0_i32_0 : i32, i32
  }
  func.func @transform_3(%arg0: i32) -> (i32, i32) {
    %c0_i32 = arith.constant 0 : i32
    %c0_i32_0 = arith.constant 0 : i32
    %c0_i32_1 = arith.constant 0 : i32
    return %c0_i32, %c0_i32_0 : i32, i32
  }
  func.func @transform_4(%arg0: i32) -> (i32, i32) {
    %c0_i32 = arith.constant 0 : i32
    %c0_i32_0 = arith.constant 0 : i32
    %c0_i32_1 = arith.constant 0 : i32
    return %c0_i32, %c0_i32_0 : i32, i32
  }
  func.func @transform_5(%arg0: i32) -> (i32, i32) {
    %c0_i32 = arith.constant 0 : i32
    %c0_i32_0 = arith.constant 0 : i32
    %c0_i32_1 = arith.constant 0 : i32
    return %c0_i32, %c0_i32_0 : i32, i32
  }
  func.func @transform_6(%arg0: i32) -> (i32, i32) {
    %c0_i32 = arith.constant 0 : i32
    %c0_i32_0 = arith.constant 0 : i32
    %c0_i32_1 = arith.constant 0 : i32
    return %c0_i32, %c0_i32_0 : i32, i32
  }
  func.func @transform_7(%arg0: i32) -> (i32, i32) {
    %c0_i32 = arith.constant 0 : i32
    %c0_i32_0 = arith.constant 0 : i32
    return %arg0, %c0_i32 : i32, i32
  }
}

</mosaic_0001>

<llo_original>
// kernel: multitask_forward.1
$region0: #{multitask_forward.1}
  #allocation0 [shape = 'u32[]', space=smem, size = 0x4, offset = 0x4, fixed_abs, tag = 'smem constant byte address 0x4 - core index']
  #allocation1 [shape = 'u32[144,128]{1,0:T(1,128)}', space=vmem, size = 0x12000, scoped, tag = 'internal scratch']
  %s0 = inlined_call_operand.vmem [shape: bf16[2,64], index: 0, kind: input, shape index: {}]
  %s1 = inlined_call_operand.vmem [shape: bf16[2,40], index: 1, kind: input, shape index: {}]
  %s2 = inlined_call_operand.vmem [shape: bf16[64,64], index: 2, kind: input, shape index: {}]
  %s3 = inlined_call_operand.vmem [shape: bf16[40,64], index: 3, kind: input, shape index: {}]
  %s4 = inlined_call_operand.vmem [shape: f32[1,64], index: 4, kind: input, shape index: {}]
  %s5 = inlined_call_operand.vmem [shape: f32[64,2], index: 5, kind: input, shape index: {}]
  %s6 = inlined_call_operand.vmem [shape: f32[1,2], index: 6, kind: input, shape index: {}]
  %s7 = inlined_call_operand.hbm [shape: f32[2,2], index: 7, kind: output, shape index: {}]
  %s8 = sld [smem:[#allocation0]]
  $region38: #{multitask_forward.1} parent=0
    _
  %s10 = ssub.s32 1, %s8
  %s11 = scalar_select 0, %s10, %s8
  $region1: #{multitask_forward.1} parent=0
    #allocation2 [shape = 'u8[1024]{0}', space=vmem, size = 0x400, scoped, tag = 'output window, operand 0, single buffered']
    #allocation3 [shape = 's32[1]{0}', space=sflag, size = 0x4, scoped, tag = 'scoped memory for multitask_forward.1']
    %12 = vsyncpa [#allocation3], 0
    // Predicated region
    $region2: #{multitask_forward.1} parent=1 // pred_check
      _
    $region3: #{multitask_forward.1} parent=1 // pred_check_branch
      %14 = sbr.rel (0) target = $region5
    $region4: #{multitask_forward.1} parent=1 // pred_region
      _
    $region5: #{multitask_forward.1} parent=1 // pred_fallthru
      _
    // Predicated region
    $region6: #{multitask_forward.1} parent=1 // pred_check
      _
    $region7: #{multitask_forward.1} parent=1 // pred_check_branch
      %16 = sbr.rel (0) target = $region9
    $region8: #{multitask_forward.1} parent=1 // pred_region
      _
    $region9: #{multitask_forward.1} parent=1 // pred_fallthru
      _
    // Predicated region
    $region10: #{multitask_forward.1} parent=1 // pred_check
      _
    $region11: #{multitask_forward.1} parent=1 // pred_check_branch
      %18 = sbr.rel (0) target = $region13
    $region12: #{multitask_forward.1} parent=1 // pred_region
      _
    $region13: #{multitask_forward.1} parent=1 // pred_fallthru
      _
    // Predicated region
    $region14: #{multitask_forward.1} parent=1 // pred_check
      _
    $region15: #{multitask_forward.1} parent=1 // pred_check_branch
      %20 = sbr.rel (0) target = $region17
    $region16: #{multitask_forward.1} parent=1 // pred_region
      _
    $region17: #{multitask_forward.1} parent=1 // pred_fallthru
      _
    // Predicated region
    $region18: #{multitask_forward.1} parent=1 // pred_check
      _
    $region19: #{multitask_forward.1} parent=1 // pred_check_branch
      %22 = sbr.rel (0) target = $region21
    $region20: #{multitask_forward.1} parent=1 // pred_region
      _
    $region21: #{multitask_forward.1} parent=1 // pred_fallthru
      _
    // Predicated region
    $region22: #{multitask_forward.1} parent=1 // pred_check
      _
    $region23: #{multitask_forward.1} parent=1 // pred_check_branch
      %24 = sbr.rel (0) target = $region25
    $region24: #{multitask_forward.1} parent=1 // pred_region
      _
    $region25: #{multitask_forward.1} parent=1 // pred_fallthru
      _
    // Predicated region
    $region26: #{multitask_forward.1} parent=1 // pred_check
      _
    $region27: #{multitask_forward.1} parent=1 // pred_check_branch
      %26 = sbr.rel (0) target = $region29
    $region28: #{multitask_forward.1} parent=1 // pred_region
      _
    $region29: #{multitask_forward.1} parent=1 // pred_fallthru
      _
    %v28 = vld [vmem:[%s0] sm:$0x1]
    %v29 = vld [vmem:[%s2] sm:$0xf]
    %v30 = vld [vmem:[%s2 + $0x4] sm:$0xf]
    %v31 = vld [vmem:[%s2 + $0x8] sm:$0xf]
    %v32 = vld [vmem:[%s2 + $0xc] sm:$0xf]
    %v33 = vld [vmem:[%s2 + $0x10] sm:$0xf]
    %v34 = vld [vmem:[%s2 + $0x14] sm:$0xf]
    %v35 = vld [vmem:[%s2 + $0x18] sm:$0xf]
    %v36 = vld [vmem:[%s2 + $0x1c] sm:$0xf]
    %v37 = vld [vmem:[%s1] sm:$0x1]
    %v38 = vld [vmem:[%s3] sm:$0xf]
    %v39 = vld [vmem:[%s3 + $0x4] sm:$0xf]
    %v40 = vld [vmem:[%s3 + $0x8] sm:$0xf]
    %v41 = vld [vmem:[%s3 + $0xc] sm:$0xf]
    %v42 = vld [vmem:[%s3 + $0x10] sm:$0xf]
    %v48 = vunpack.c.l.b16 %v38
    %v49 = vunpack.c.l.b16 %v39
    %v50 = vunpack.c.l.b16 %v40
    %v51 = vunpack.c.l.b16 %v41
    %v52 = vunpack.c.l.b16 %v42
    %v53 = vpack.c.b16 %v49, %v48
    %v54 = vpack.c.b16 %v51, %v50
    %v55 = vpack.c.b16 %v52, %v52
    %vm58 = vcmask 326656
    %v60 = vsel %vm58, %v37, 0
    %vm62 = vcmask 1043456
    %v64 = vsel %vm62, %v55, 0
    %66 = vmatprep.subr.bf16.mxu0 0
    %67 = vmatpush1.bf16.msra.mxu0 %v53
    %68 = vmatprep.subr.bf16.mxu0 0
    %69 = vmatpush1.bf16.msra.mxu0 %v54
    %70 = vmatprep.subr.bf16.mxu0 0
    %71 = vmatpush1.bf16.msra.mxu0 %v64
    %72 = vmatprep.subr.bf16.mxu0 0
    %73 = vmatpush1.bf16.msra.mxu0 0
    %74 = vmatprep.subr.bf16.mxu0 0
    %75 = vmatpush1.bf16.msra.mxu0 0
    %76 = vmatprep.subr.bf16.mxu0 0
    %77 = vmatpush1.bf16.msra.mxu0 0
    %78 = vmatprep.subr.bf16.mxu0 0
    %79 = vmatpush1.bf16.msra.mxu0 0
    %80 = vmatprep.subr.bf16.mxu0 0
    %81 = vmatpush1.bf16.msra.mxu0 0
    %82 = vmatprep.subr.bf16.mxu0 0
    %83 = vmatpush1.bf16.msra.mxu0 0
    %84 = vmatprep.subr.bf16.mxu0 0
    %85 = vmatpush1.bf16.msra.mxu0 0
    %86 = vmatprep.subr.bf16.mxu0 0
    %87 = vmatpush1.bf16.msra.mxu0 0
    %88 = vmatprep.subr.bf16.mxu0 0
    %89 = vmatpush1.bf16.msra.mxu0 0
    %90 = vmatprep.subr.bf16.mxu0 0
    %91 = vmatpush1.bf16.msra.mxu0 0
    %92 = vmatprep.subr.bf16.mxu0 0
    %93 = vmatpush1.bf16.msra.mxu0 0
    %94 = vmatprep.subr.bf16.mxu0 0
    %95 = vmatpush1.bf16.msra.mxu0 0
    %96 = vmatprep.subr.bf16.mxu0 0
    %97 = vmatpush1.bf16.msra.mxu0 0
    %98 = vmatprep.mubr.bf16.mxu0 0
    %99 = vmatmul.mubr.bf16.gmra.mrb[0].mxu0 %v60
    %v100 = vpop.f32.mrb[0].mxu0
    %v101 = vadd.f32 0.0, %v100
    %v102 = vpop.f32.mrb[0].mxu0
    %v103 = vpop.f32.mrb[0].mxu0
    %v104 = vpop.f32.mrb[0].mxu0
    %105 = vdwg.mxu0
    %v114 = vunpack.c.l.b16 %v29
    %v115 = vunpack.c.l.b16 %v30
    %v116 = vunpack.c.l.b16 %v31
    %v117 = vunpack.c.l.b16 %v32
    %v118 = vunpack.c.l.b16 %v33
    %v119 = vunpack.c.l.b16 %v34
    %v120 = vunpack.c.l.b16 %v35
    %v121 = vunpack.c.l.b16 %v36
    %v122 = vpack.c.b16 %v115, %v114
    %v123 = vpack.c.b16 %v117, %v116
    %v124 = vpack.c.b16 %v119, %v118
    %v125 = vpack.c.b16 %v121, %v120
    %vm130 = vcmask 523264
    %v132 = vsel %vm130, %v28, 0
    %134 = vmatprep.subr.bf16.mxu0 0
    %135 = vmatpush1.bf16.msra.mxu0 %v122
    %136 = vmatprep.subr.bf16.mxu0 0
    %137 = vmatpush1.bf16.msra.mxu0 %v123
    %138 = vmatprep.subr.bf16.mxu0 0
    %139 = vmatpush1.bf16.msra.mxu0 %v124
    %140 = vmatprep.subr.bf16.mxu0 0
    %141 = vmatpush1.bf16.msra.mxu0 %v125
    %142 = vmatprep.subr.bf16.mxu0 0
    %143 = vmatpush1.bf16.msra.mxu0 0
    %144 = vmatprep.subr.bf16.mxu0 0
    %145 = vmatpush1.bf16.msra.mxu0 0
    %146 = vmatprep.subr.bf16.mxu0 0
    %147 = vmatpush1.bf16.msra.mxu0 0
    %148 = vmatprep.subr.bf16.mxu0 0
    %149 = vmatpush1.bf16.msra.mxu0 0
    %150 = vmatprep.subr.bf16.mxu0 0
    %151 = vmatpush1.bf16.msra.mxu0 0
    %152 = vmatprep.subr.bf16.mxu0 0
    %153 = vmatpush1.bf16.msra.mxu0 0
    %154 = vmatprep.subr.bf16.mxu0 0
    %155 = vmatpush1.bf16.msra.mxu0 0
    %156 = vmatprep.subr.bf16.mxu0 0
    %157 = vmatpush1.bf16.msra.mxu0 0
    %158 = vmatprep.subr.bf16.mxu0 0
    %159 = vmatpush1.bf16.msra.mxu0 0
    %160 = vmatprep.subr.bf16.mxu0 0
    %161 = vmatpush1.bf16.msra.mxu0 0
    %162 = vmatprep.subr.bf16.mxu0 0
    %163 = vmatpush1.bf16.msra.mxu0 0
    %164 = vmatprep.subr.bf16.mxu0 0
    %165 = vmatpush1.bf16.msra.mxu0 0
    %166 = vmatprep.mubr.bf16.mxu0 0
    %167 = vmatmul.mubr.bf16.gmra.mrb[0].mxu0 %v132
    %v168 = vpop.f32.mrb[0].mxu0
    %v169 = vadd.f32 %v101, %v168
    %v170 = vpop.f32.mrb[0].mxu0
    %v171 = vpop.f32.mrb[0].mxu0
    %v172 = vpop.f32.mrb[0].mxu0
    %173 = vdwg.mxu0
    %v174 = vld [vmem:[%s4] sm:$0x1]
    %v176 = vlaneseq
    %v177 = vshrl.u32 %v176, 7
    %v178 = vsub.s32 0, %v177
    %v179 = vrot.slane %v174, %v178
    %v181 = vadd.f32 %v169, %v179
    %v182 = vxor.u32 %v181, 2147483648
    %v183 = vmul.f32 %v182, 1.442695
    %v184 = vpow.pop %v183
    %v185 = vadd.f32 %v184, 1.0
    %v186 = vrcp.pop %v185
    %v187 = vmul.f32 1.0, %v186
    %v188 = vmul.f32 %v181, %v187
    %v189 = vld [vmem:[%s5] sm:$0xff]
    %v190 = vld [vmem:[%s5 + $0x8] sm:$0xff]
    %v191 = vld [vmem:[%s5 + $0x10] sm:$0xff]
    %v192 = vld [vmem:[%s5 + $0x18] sm:$0xff]
    %v193 = vld [vmem:[%s5 + $0x20] sm:$0xff]
    %v194 = vld [vmem:[%s5 + $0x28] sm:$0xff]
    %v195 = vld [vmem:[%s5 + $0x30] sm:$0xff]
    %v196 = vld [vmem:[%s5 + $0x38] sm:$0xff]
    %v197 = vld [vmem:[%s6] sm:$0x1]
    %v199 = vlaneseq
    %v200 = vshrl.u32 %v199, 7
    %v201 = vsub.s32 0, %v200
    %v202 = vrot.slane %v197, %v201
    %v205 = vsel %vm130, %v188, 0
    %207 = vmatprep.subr.mxu0 0.0
    %208 = vmatpush1.msra.mxu0 %v189
    %209 = vmatprep.subr.mxu0 0.0
    %210 = vmatpush1.msra.mxu0 %v190
    %211 = vmatprep.subr.mxu0 0.0
    %212 = vmatpush1.msra.mxu0 %v191
    %213 = vmatprep.subr.mxu0 0.0
    %214 = vmatpush1.msra.mxu0 %v192
    %215 = vmatprep.subr.mxu0 0.0
    %216 = vmatpush1.msra.mxu0 %v193
    %217 = vmatprep.subr.mxu0 0.0
    %218 = vmatpush1.msra.mxu0 %v194
    %219 = vmatprep.subr.mxu0 0.0
    %220 = vmatpush1.msra.mxu0 %v195
    %221 = vmatprep.subr.mxu0 0.0
    %222 = vmatpush1.msra.mxu0 %v196
    %223 = vmatprep.subr.mxu0 0.0
    %224 = vmatpush1.msra.mxu0 0.0
    %225 = vmatprep.subr.mxu0 0.0
    %226 = vmatpush1.msra.mxu0 0.0
    %227 = vmatprep.subr.mxu0 0.0
    %228 = vmatpush1.msra.mxu0 0.0
    %229 = vmatprep.subr.mxu0 0.0
    %230 = vmatpush1.msra.mxu0 0.0
    %231 = vmatprep.subr.mxu0 0.0
    %232 = vmatpush1.msra.mxu0 0.0
    %233 = vmatprep.subr.mxu0 0.0
    %234 = vmatpush1.msra.mxu0 0.0
    %235 = vmatprep.subr.mxu0 0.0
    %236 = vmatpush1.msra.mxu0 0.0
    %237 = vmatprep.subr.mxu0 0.0
    %238 = vmatpush1.msra.mxu0 0.0
    %239 = vmatprep.subr.mxu0 0.0
    %240 = vmatpush1.msra.mxu0 0.0
    %241 = vmatprep.subr.mxu0 0.0
    %242 = vmatpush1.msra.mxu0 0.0
    %243 = vmatprep.subr.mxu0 0.0
    %244 = vmatpush1.msra.mxu0 0.0
    %245 = vmatprep.subr.mxu0 0.0
    %246 = vmatpush1.msra.mxu0 0.0
    %247 = vmatprep.subr.mxu0 0.0
    %248 = vmatpush1.msra.mxu0 0.0
    %249 = vmatprep.subr.mxu0 0.0
    %250 = vmatpush1.msra.mxu0 0.0
    %251 = vmatprep.subr.mxu0 0.0
    %252 = vmatpush1.msra.mxu0 0.0
    %253 = vmatprep.subr.mxu0 0.0
    %254 = vmatpush1.msra.mxu0 0.0
    %255 = vmatprep.subr.mxu0 0.0
    %256 = vmatpush1.msra.mxu0 0.0
    %257 = vmatprep.subr.mxu0 0.0
    %258 = vmatpush1.msra.mxu0 0.0
    %259 = vmatprep.subr.mxu0 0.0
    %260 = vmatpush1.msra.mxu0 0.0
    %261 = vmatprep.subr.mxu0 0.0
    %262 = vmatpush1.msra.mxu0 0.0
    %263 = vmatprep.subr.mxu0 0.0
    %264 = vmatpush1.msra.mxu0 0.0
    %265 = vmatprep.subr.mxu0 0.0
    %266 = vmatpush1.msra.mxu0 0.0
    %267 = vmatprep.subr.mxu0 0.0
    %268 = vmatpush1.msra.mxu0 0.0
    %269 = vmatprep.subr.mxu0 0.0
    %270 = vmatpush1.msra.mxu0 0.0
    %271 = vmatprep.mubr.f32.mxu0 0.0
    %272 = vmatmul.mubr.f32.gmra.mrb[0].mxu0 %v205
    %v273 = vpop.f32.mrb[0].mxu0
    %v274 = vadd.f32 %v202, %v273
    %v275 = vpop.f32.mrb[0].mxu0
    %276 = vdwg.mxu0
    %vm277 = vcmask 9216
    %278 = vst.msk [vmem:[#allocation2] sm:$0x3] %vm277, %v274
    // Predicated region
    $region30: #{multitask_forward.1} parent=1 // pred_check
      _
    $region31: #{multitask_forward.1} parent=1 // pred_check_branch
      %280 = sbr.rel (0) target = $region33
    $region32: #{multitask_forward.1} parent=1 // pred_region
      %s282 = ssub.s32 32, 32
      %283 = vsyncadd [#allocation3], %s282
      %s285 = sshll.u32 [#allocation2], 4
      %s286 = int_to_ptr.vmem [resolvable:$true] %s285
      %288 = dma.vmem_to_hbm [thread:$0]  %s286, 32, %s7, [#allocation3]
    $region33: #{multitask_forward.1} parent=1 // pred_fallthru
      _
    // Predicated region
    $region34: #{multitask_forward.1} parent=1 // pred_check
      _
    $region35: #{multitask_forward.1} parent=1 // pred_check_branch
      %290 = sbr.rel (0) target = $region37
    $region36: #{multitask_forward.1} parent=1 // pred_region
      %291 = dma.done [#allocation3], 32
    $region37: #{multitask_forward.1} parent=1 // pred_fallthru
      _
    %292 = vsyncpa [#allocation3], 1

</llo_original>
